<compile_context>
chip_gen: v5e
topology: v5e:2x2
jax: 0.10.0
libtpu: 0.0.40
codegen_flags: <defaults>
</compile_context>

<pallas_src>
import math

import jax
import jax.numpy as jnp
from jax import lax
from jax.experimental import pallas as pl
from jax.experimental.pallas import tpu as pltpu

S_SCALE = 10.0
MARGIN = 0.1
COS_M = math.cos(MARGIN)
S_SIN_M = S_SCALE * math.sin(MARGIN)


def _scores(f_f32, w_bf16, inv_w):
    """Per-tile math shared by both kernels.

    cos_sim = <f_n, w>/||w||  (true cosine; the reference's /10 and *s cancel)
      e   = exp(cos_theta * s)        = exp(cos_sim)
      top = exp(cos(a + m) * s)       = exp(cos_sim*cos(m) - s*sin(m)*sin(a)),
            sin(a) = sqrt(1 - (cos_sim/10)^2)
    """
    cos_sim = jnp.dot(f_f32.astype(jnp.bfloat16), w_bf16,
                      preferred_element_type=jnp.float32) * inv_w
    e = jnp.exp(cos_sim)
    sin_a = jnp.sqrt(jnp.maximum(1.0 - 0.01 * cos_sim * cos_sim, 0.0))
    top = jnp.exp(cos_sim * COS_M - S_SIN_M * sin_a)
    return e, top


def _arcloss_single_tile_kernel(f_ref, w_ref, invw_ref, o_ref):
    """Whole class dim in one tile: one pass, bottom reduced in-tile."""
    e, top = _scores(f_ref[...], w_ref[...], invw_ref[...])
    bottom = jnp.sum(e, axis=1, keepdims=True)               # (tb, 1)
    denom = bottom - e + top                                  # > 0 always
    o_ref[...] = (top * pl.reciprocal(denom, approx=True)
                  + 1e-10).astype(o_ref.dtype)


def _arcloss_two_phase_kernel(f_ref, w_ref, invw_ref, o_ref,
                              top_c, dmt_c, bot_acc):
    """grid = (nb, 2, nc).  Phase 0: stream weight tiles once, cache `top` and
    `top - e` in VMEM, lane-fold `e` into bottom partials.  Phase 1: read the
    caches (no HBM / MXU / exp work) and emit the output tile."""
    p = pl.program_id(1)           # 0: compute + cache, 1: emit
    k = pl.program_id(2)           # class-tile index
    _, tc = o_ref.shape
    col0 = pl.multiple_of(k * tc, 128)

    @pl.when(p == 0)
    def _phase0():
        @pl.when(k == 0)
        def _init():
            bot_acc[...] = jnp.zeros_like(bot_acc)

        e, top = _scores(f_ref[...], w_ref[...], invw_ref[...])
        top_c[:, pl.ds(col0, tc)] = top
        dmt_c[:, pl.ds(col0, tc)] = top - e
        # Per-lane partial sums for `bottom` (VPU adds); single XLU reduce later.
        acc = bot_acc[...]
        for j in range(tc // 128):
            acc = acc + e[:, j * 128:(j + 1) * 128]
        bot_acc[...] = acc

    @pl.when(p == 1)
    def _phase1():
        bottom = jnp.sum(bot_acc[...], axis=1, keepdims=True)   # (tb, 1)
        top = top_c[:, pl.ds(col0, tc)]
        d = dmt_c[:, pl.ds(col0, tc)]                            # top - e
        o_ref[...] = (top * pl.reciprocal(bottom + d, approx=True)
                      + 1e-10).astype(o_ref.dtype)


def arc_loss(feature, weight, *, tb=128, tc=512):
    """feature: (B, F) fp32, weight: (F, C) fp32 -> (B, C) fp32."""
    B, F = feature.shape
    F2, C = weight.shape
    assert F == F2
    tb = min(tb, B)
    tc = min(tc, C)
    assert B % tb == 0 and tb % 8 == 0, "row tile must divide B, multiple of 8"
    assert C % tc == 0 and tc % 128 == 0, "class tile must divide C, mult of 128"
    nb, nc = B // tb, C // tc

    # Wrapper-side prep (review): fp32 row-normalized features (before the bf16
    # MXU cast), bf16 weights for the dominant HBM stream, fp32 inverse column
    # norms so the kernel never redoes the axis-0 sum-of-squares reduce.
    f_n = feature * lax.rsqrt(
        jnp.maximum(jnp.sum(feature * feature, axis=1, keepdims=True), 1e-24))
    w_bf16 = weight.astype(jnp.bfloat16)
    inv_w = lax.rsqrt(
        jnp.maximum(jnp.sum(weight * weight, axis=0, keepdims=True), 1e-24))

    # Explicit scoped-VMEM limit (v5e default is only 16 MiB); capped at v7x's
    # 64 MiB physical VMEM.
    needed = (2 * tb * C * 4 + tb * 128 * 4
              + 2 * (tb * F * 4 + F * tc * 2 + tc * 4 + tb * tc * 4))
    vmem_limit = int(min(max(2 * needed, 32 << 20), 64 << 20))

    if nc == 1:
        # Entire class dim fits in one tile -> no phases, no caches.
        grid_spec = pltpu.PrefetchScalarGridSpec(
            num_scalar_prefetch=0,
            grid=(nb,),
            in_specs=[
                pl.BlockSpec((tb, F), lambda i: (i, 0)),
                pl.BlockSpec((F, C), lambda i: (0, 0)),
                pl.BlockSpec((1, C), lambda i: (0, 0)),
            ],
            out_specs=pl.BlockSpec((tb, C), lambda i: (i, 0)),
        )
        kernel = _arcloss_single_tile_kernel
        semantics = ("parallel",)
    else:
        grid_spec = pltpu.PrefetchScalarGridSpec(
            num_scalar_prefetch=0,
            grid=(nb, 2, nc),
            in_specs=[
                pl.BlockSpec((tb, F), lambda i, p, k: (i, 0)),
                # Phase 1 pins the weight / inv_w maps on the block fetched at
                # the end of phase 0 -> zero refetch: weight streamed once/row.
                pl.BlockSpec((F, tc),
                             lambda i, p, k: (0, (1 - p) * k + p * (nc - 1))),
                pl.BlockSpec((1, tc),
                             lambda i, p, k: (0, (1 - p) * k + p * (nc - 1))),
            ],
            # Phase 0 keeps the output pinned on block (i, 0); that block is
            # first written at (p=1, k=0) before its index ever changes, so no
            # stale block is flushed.  NOTE: relies on the current
            # writeback-on-block-index-change semantics (each block is visited
            # in one contiguous run) -- verified by the tiled test below.
            out_specs=pl.BlockSpec((tb, tc), lambda i, p, k: (i, p * k)),
            scratch_shapes=[
                pltpu.VMEM((tb, C), jnp.float32),    # cached top
                pltpu.VMEM((tb, C), jnp.float32),    # cached top - e
                pltpu.VMEM((tb, 128), jnp.float32),  # per-lane bottom partials
            ],
        )
        kernel = _arcloss_two_phase_kernel
        semantics = ("parallel", "arbitrary", "arbitrary")

    return pl.pallas_call(
        kernel,
        out_shape=jax.ShapeDtypeStruct((B, C), jnp.float32),
        grid_spec=grid_spec,
        compiler_params=pltpu.CompilerParams(
            dimension_semantics=semantics,
            vmem_limit_bytes=vmem_limit),
    )(f_n, w_bf16, inv_w)


def arc_loss_ref(feature, weight):
    """Pure-JAX reference mirroring the PyTorch forward (fp32 everywhere)."""
    f = feature / jnp.maximum(
        jnp.linalg.norm(feature, axis=1, keepdims=True), 1e-12)
    w = weight / jnp.maximum(
        jnp.linalg.norm(weight, axis=0, keepdims=True), 1e-12)
    cos_t = jnp.matmul(f, w) / 10.0
    a = jnp.arccos(cos_t)
    top = jnp.exp(jnp.cos(a + MARGIN) * S_SCALE)
    _top = jnp.exp(jnp.cos(a) * S_SCALE)
    bottom = jnp.sum(jnp.exp(cos_t * S_SCALE), axis=1, keepdims=True)
    return top / (bottom - _top + top) + 1e-10


if __name__ == "__main__":
    # batch=16, feature_dim=64, cls_dim=256
    B, FEAT, CLS = 16, 64, 256
    key = jax.random.PRNGKey(0)
    kf, kw = jax.random.split(key)

    feature = jax.random.normal(kf, (B, FEAT), dtype=jnp.float32)
    # nn.Parameter(torch.randn(feature_dim, cls_dim)) -> deterministic randn
    weight = jax.random.normal(kw, (FEAT, CLS), dtype=jnp.float32)

    ref = arc_loss_ref(feature, weight)

    # Path 1: class dim in one tile -> single-phase kernel, grid (2,).
    out_single = arc_loss(feature, weight, tb=8, tc=256)
    jax.block_until_ready(out_single)

    # Path 2: tiled class dim -> two-phase cached kernel, grid (2, 2, 2).
    out_tiled = arc_loss(feature, weight, tb=8, tc=128)
    jax.block_until_ready(out_tiled)

    # Tolerance accounts for bf16 weights on the MXU (fp32 accumulation, fp32
    # elementwise chain) and the approximate reciprocal.
    for name, out in (("single", out_single), ("tiled", out_tiled)):
        assert out.shape == (B, CLS)
        err = float(jnp.max(jnp.abs(out - ref)))
        assert jnp.allclose(out, ref, atol=5e-4, rtol=1e-2), (
            f"{name}: max abs err {err}")
    print("KERNEL_OK")
</pallas_src>

<mosaic_0001>
module attributes {stable_mosaic.version = 11 : i64} {
  func.func @_arcloss_single_tile_kernel(%arg0: i32, %arg1: memref<8x64xf32, #tpu.memory_space<vmem>>, %arg2: memref<64x256xbf16, #tpu.memory_space<vmem>>, %arg3: memref<1x256xf32, #tpu.memory_space<vmem>>, %arg4: memref<8x256xf32, #tpu.memory_space<vmem>>) attributes {dimension_semantics = [#tpu.dimension_semantics<parallel>], iteration_bounds = array<i64: 2>, scalar_prefetch = 0 : i64, scratch_operands = 0 : i64, tpu.core_type = #tpu.core_type<tc>, window_params = [{transform_indices = @transform_0, window_bounds = array<i64: 8, 64>}, {pipeline_mode = #tpu.pipeline_mode<synchronous>, transform_indices = @transform_1, window_bounds = array<i64: 64, 256>}, {pipeline_mode = #tpu.pipeline_mode<synchronous>, transform_indices = @transform_2, window_bounds = array<i64: 1, 256>}, {transform_indices = @transform_3, window_bounds = array<i64: 8, 256>}]} {
    %c0 = arith.constant 0 : index
    %c0_0 = arith.constant 0 : index
    %0 = vector.load %arg1[%c0, %c0_0] : memref<8x64xf32, #tpu.memory_space<vmem>>, vector<8x64xf32>
    %c0_1 = arith.constant 0 : index
    %c0_2 = arith.constant 0 : index
    %1 = vector.load %arg2[%c0_1, %c0_2] : memref<64x256xbf16, #tpu.memory_space<vmem>>, vector<64x256xbf16>
    %c0_3 = arith.constant 0 : index
    %c0_4 = arith.constant 0 : index
    %2 = vector.load %arg3[%c0_3, %c0_4] : memref<1x256xf32, #tpu.memory_space<vmem>>, vector<1x256xf32>
    %3 = arith.truncf %0 : vector<8x64xf32> to vector<8x64xbf16>
    %cst = arith.constant dense<0.000000e+00> : vector<8x256xf32>
    %4 = tpu.matmul %3, %1, %cst {dimension_numbers = #tpu.dot_dimension_numbers<[1], [0], [0], [1], [0, 0, 1, 1], [], []>} : vector<8x64xbf16>, vector<64x256xbf16>, vector<8x256xf32> -> vector<8x256xf32>
    %5 = vector.broadcast %2 : vector<1x256xf32> to vector<8x256xf32>
    %6 = arith.mulf %4, %5 : vector<8x256xf32>
    %7 = math.exp %6 : vector<8x256xf32>
    %cst_5 = arith.constant 0.00999999977 : f32
    %8 = vector.broadcast %cst_5 : f32 to vector<8x256xf32>
    %9 = arith.mulf %8, %6 : vector<8x256xf32>
    %10 = arith.mulf %9, %6 : vector<8x256xf32>
    %cst_6 = arith.constant 1.000000e+00 : f32
    %11 = vector.broadcast %cst_6 : f32 to vector<8x256xf32>
    %12 = arith.subf %11, %10 : vector<8x256xf32>
    %cst_7 = arith.constant 0.000000e+00 : f32
    %13 = vector.broadcast %cst_7 : f32 to vector<8x256xf32>
    %14 = arith.maximumf %12, %13 : vector<8x256xf32>
    %15 = math.sqrt %14 : vector<8x256xf32>
    %cst_8 = arith.constant 0.995004177 : f32
    %16 = vector.broadcast %cst_8 : f32 to vector<8x256xf32>
    %17 = arith.mulf %6, %16 : vector<8x256xf32>
    %cst_9 = arith.constant 0.998334169 : f32
    %18 = vector.broadcast %cst_9 : f32 to vector<8x256xf32>
    %19 = arith.mulf %18, %15 : vector<8x256xf32>
    %20 = arith.subf %17, %19 : vector<8x256xf32>
    %21 = math.exp %20 : vector<8x256xf32>
    %cst_10 = arith.constant dense<0.000000e+00> : vector<8xf32>
    %22 = vector.multi_reduction <add>, %7, %cst_10 [1] : vector<8x256xf32> to vector<8xf32>
    %23 = vector.shape_cast %22 : vector<8xf32> to vector<8x1xf32>
    %24 = vector.broadcast %23 : vector<8x1xf32> to vector<8x256xf32>
    %25 = arith.subf %24, %7 : vector<8x256xf32>
    %26 = arith.addf %25, %21 : vector<8x256xf32>
    %27 = tpu.reciprocal %26 {approx = true} : vector<8x256xf32> -> vector<8x256xf32>
    %28 = arith.mulf %21, %27 : vector<8x256xf32>
    %cst_11 = arith.constant 1.000000e-10 : f32
    %29 = vector.broadcast %cst_11 : f32 to vector<8x256xf32>
    %30 = arith.addf %28, %29 : vector<8x256xf32>
    %c0_12 = arith.constant 0 : index
    %c0_13 = arith.constant 0 : index
    %31 = vector.load %arg4[%c0_12, %c0_13] : memref<8x256xf32, #tpu.memory_space<vmem>>, vector<8x256xf32>
    tpu.vector_store %arg4[%c0_12, %c0_13], %30 {strides = array<i32>} : memref<8x256xf32, #tpu.memory_space<vmem>>, vector<8x256xf32>,
    return
  }
  func.func @transform_0(%arg0: i32) -> (i32, i32) {
    %c0_i32 = arith.constant 0 : i32
    %c0_i32_0 = arith.constant 0 : i32
    return %arg0, %c0_i32 : i32, i32
  }
  func.func @transform_1(%arg0: i32) -> (i32, i32) {
    %c0_i32 = arith.constant 0 : i32
    %c0_i32_0 = arith.constant 0 : i32
    %c0_i32_1 = arith.constant 0 : i32
    return %c0_i32, %c0_i32_0 : i32, i32
  }
  func.func @transform_2(%arg0: i32) -> (i32, i32) {
    %c0_i32 = arith.constant 0 : i32
    %c0_i32_0 = arith.constant 0 : i32
    %c0_i32_1 = arith.constant 0 : i32
    return %c0_i32, %c0_i32_0 : i32, i32
  }
  func.func @transform_3(%arg0: i32) -> (i32, i32) {
    %c0_i32 = arith.constant 0 : i32
    %c0_i32_0 = arith.constant 0 : i32
    return %arg0, %c0_i32 : i32, i32
  }
}

</mosaic_0001>

<llo_original>
// kernel: tpu_custom_call.1
$region0: #{tpu_custom_call.1}
  #allocation0 [shape = 'u32[]', space=smem, size = 0x4, offset = 0x4, fixed_abs, tag = 'smem constant byte address 0x4 - core index']
  #allocation1 [shape = 'u32[72,128]{1,0:T(1,128)}', space=vmem, size = 0x9000, scoped, tag = 'internal scratch']
  %s0 = inlined_call_operand.hbm [shape: f32[16,64], index: 0, kind: input, shape index: {}]
  %s1 = inlined_call_operand.hbm [shape: bf16[64,256], index: 1, kind: input, shape index: {}]
  %s2 = inlined_call_operand.hbm [shape: f32[1,256], index: 2, kind: input, shape index: {}]
  %s3 = inlined_call_operand.hbm [shape: f32[16,256], index: 3, kind: output, shape index: {}]
  %s4 = sld [smem:[#allocation0]]
  $region57: #{tpu_custom_call.1} parent=0
    _
  %s6 = ssub.s32 1, %s4
  %s7 = scalar_select 0, %s6, %s4
  $region1: #{tpu_custom_call.1} parent=0
    #allocation2 [shape = 'u8[8192]{0}', space=vmem, size = 0x2000, scoped, tag = 'input window, operand 0']
    #allocation3 [shape = 's32[2]{0}', space=sflag, size = 0x8, scoped, tag = 'scoped memory for tpu_custom_call.1']
    #allocation4 [shape = 's32[2]{0}', space=sflag, size = 0x8, scoped, tag = 'scoped memory for tpu_custom_call.1']
    #allocation5 [shape = 'u8[32768]{0}', space=vmem, size = 0x8000, scoped, tag = 'input window, operand 1, single buffered']
    #allocation6 [shape = 's32[1]{0}', space=sflag, size = 0x4, scoped, tag = 'scoped memory for tpu_custom_call.1']
    #allocation7 [shape = 'u8[1024]{0}', space=vmem, size = 0x400, scoped, tag = 'input window, operand 2, single buffered']
    #allocation8 [shape = 'u8[16384]{0}', space=vmem, size = 0x4000, scoped, tag = 'output window, operand 0']
    %8 = vsyncpa [#allocation3], 0
    %s9 = scalar_lea.sflag [#allocation3], 1
    %10 = vsyncpa %s9, 0
    %11 = vsyncpa [#allocation6], 0
    %12 = vsyncpa [#allocation4], 0
    %s13 = scalar_lea.sflag [#allocation4], 1
    %14 = vsyncpa %s13, 0
    loop: start=0, step=1, limit=4
    $region2: #{tpu_custom_call.1} parent=1 // loop_pre_header
      _
    $region3: #{tpu_custom_call.1} parent=1 // loop_header
      %s16 = sphi 0, %s20
      %p17 = scmp.ge.s32.totalorder %s16, 4
      %s26 = sphi 0, %s28
      %s29 = sphi 0, %s26
      %s30 = sphi 0, %s29
      %s46 = sphi 0, %s30
      %s50 = sphi 0, %s50
      %s52 = sphi 0, %s50
      %s53 = sphi 0, %s52
      %s67 = sphi 0, %s53
      %s71 = sphi 0, %s71
      %s73 = sphi 0, %s71
      %s74 = sphi 0, %s73
      %s88 = sphi 0, %s74
      %s94 = sphi 0, %s96
      %s97 = sphi 0, %s94
      %s98 = sphi 0, %s97
      %s114 = sphi 0, %s98
    $region4: #{tpu_custom_call.1} parent=1 // loop_header_branch
      %19 = sbr.rel (%p17) target = $region8
    $region5: #{tpu_custom_call.1} parent=1 // loop_body
      %s21 = ssub.s32 %s16, 1
      %s22 = ssub.s32 %s16, 2
      %s23 = sadd.s32 %s16, 1
      %s24 = ssub.s32 %s16, %s23
      %p25 = scmp.eq.s32.totalorder %s24, 0
      %s27 = sadd.s32 %s26, 1
      %s28 = scalar_select %p25, %s26, %s27
      %p31 = pneg %p25
      %p32 = scmp.eq.s32.totalorder %s16, 1
      %p33 = por %p31, %p32
      %p34 = scmp.ne.s32.totalorder %s26, %s29
      %p35 = scmp.eq.s32.totalorder %s16, 0
      %p36 = por %p34, %p35
      %p37 = scmp.ne.s32.totalorder %s26, %s29
      %p38 = scmp.eq.s32.totalorder %s21, 1
      %p39 = por %p37, %p38
      %p40 = scmp.ne.s32.totalorder %s29, %s30
      %p41 = scmp.eq.s32.totalorder %s21, 0
      %p42 = por %p40, %p41
      %p43 = scmp.ne.s32.totalorder %s29, %s30
      %p44 = scmp.eq.s32.totalorder %s22, 1
      %p45 = por %p43, %p44
      %p47 = scmp.ne.s32.totalorder %s30, %s46
      %p48 = scmp.eq.s32.totalorder %s22, 0
      %p49 = por %p47, %p48
      %s51 = sadd.s32 %s50, 1
      %p54 = scmp.eq.s32.totalorder %s16, 1
      %p55 = scmp.ne.s32.totalorder %s50, %s52
      %p56 = scmp.eq.s32.totalorder %s16, 0
      %p57 = por %p55, %p56
      %p58 = scmp.ne.s32.totalorder %s50, %s52
      %p59 = scmp.eq.s32.totalorder %s21, 1
      %p60 = por %p58, %p59
      %p61 = scmp.ne.s32.totalorder %s52, %s53
      %p62 = scmp.eq.s32.totalorder %s21, 0
      %p63 = por %p61, %p62
      %p64 = scmp.ne.s32.totalorder %s52, %s53
      %p65 = scmp.eq.s32.totalorder %s22, 1
      %p66 = por %p64, %p65
      %p68 = scmp.ne.s32.totalorder %s53, %s67
      %p69 = scmp.eq.s32.totalorder %s22, 0
      %p70 = por %p68, %p69
      %s72 = sadd.s32 %s71, 1
      %p75 = scmp.eq.s32.totalorder %s16, 1
      %p76 = scmp.ne.s32.totalorder %s71, %s73
      %p77 = scmp.eq.s32.totalorder %s16, 0
      %p78 = por %p76, %p77
      %p79 = scmp.ne.s32.totalorder %s71, %s73
      %p80 = scmp.eq.s32.totalorder %s21, 1
      %p81 = por %p79, %p80
      %p82 = scmp.ne.s32.totalorder %s73, %s74
      %p83 = scmp.eq.s32.totalorder %s21, 0
      %p84 = por %p82, %p83
      %p85 = scmp.ne.s32.totalorder %s73, %s74
      %p86 = scmp.eq.s32.totalorder %s22, 1
      %p87 = por %p85, %p86
      %p89 = scmp.ne.s32.totalorder %s74, %s88
      %p90 = scmp.eq.s32.totalorder %s22, 0
      %p91 = por %p89, %p90
      %s92 = ssub.s32 %s16, %s23
      %p93 = scmp.eq.s32.totalorder %s92, 0
      %s95 = sadd.s32 %s94, 1
      %s96 = scalar_select %p93, %s94, %s95
      %p99 = pneg %p93
      %p100 = scmp.eq.s32.totalorder %s16, 1
      %p101 = por %p99, %p100
      %p102 = scmp.ne.s32.totalorder %s94, %s97
      %p103 = scmp.eq.s32.totalorder %s16, 0
      %p104 = por %p102, %p103
      %p105 = scmp.ne.s32.totalorder %s94, %s97
      %p106 = scmp.eq.s32.totalorder %s21, 1
      %p107 = por %p105, %p106
      %p108 = scmp.ne.s32.totalorder %s97, %s98
      %p109 = scmp.eq.s32.totalorder %s21, 0
      %p110 = por %p108, %p109
      %p111 = scmp.ne.s32.totalorder %s97, %s98
      %p112 = scmp.eq.s32.totalorder %s22, 1
      %p113 = por %p111, %p112
      %p115 = scmp.ne.s32.totalorder %s98, %s114
      %p116 = scmp.eq.s32.totalorder %s22, 0
      %p117 = por %p115, %p116
      %p118 = scmp.le.s32.totalorder 1, %s16
      %p119 = scmp.lt.s32.totalorder %s16, 3
      %p120 = pnand %p118, %p119
      %p121 = pneg %p120
      // Predicated region
      $region9: #{tpu_custom_call.1} parent=5 // pred_check
        _
      $region10: #{tpu_custom_call.1} parent=5 // pred_check_branch
        %123 = sbr.rel (%p120) target = $region12
      $region11: #{tpu_custom_call.1} parent=5 // pred_region
        %s124 = ssub.s32 %s16, 1
        // Predicated region
        $region13: #{tpu_custom_call.1} parent=11 // pred_check
          %p125 = pneg %p63
        $region14: #{tpu_custom_call.1} parent=11 // pred_check_branch
          %127 = sbr.rel (%p125) target = $region16
        $region15: #{tpu_custom_call.1} parent=11 // pred_region
          %129 = vsyncadd [#allocation6], 0
          %s130 = sshll.u32 %s1, 4
          %s131 = int_to_ptr.hbm [resolvable:$true] %s130
          %s132 = sshll.u32 [#allocation5], 4
          %s133 = int_to_ptr.vmem [resolvable:$true] %s132
          %138 = dma.hbm_to_vmem [thread:$0]  %s131, 1024, %s133, [#allocation6], 128, 128, 8
        $region16: #{tpu_custom_call.1} parent=11 // pred_fallthru
          _
        // Predicated region
        $region17: #{tpu_custom_call.1} parent=11 // pred_check
          %p139 = pneg %p84
        $region18: #{tpu_custom_call.1} parent=11 // pred_check_branch
          %141 = sbr.rel (%p139) target = $region20
        $region19: #{tpu_custom_call.1} parent=11 // pred_region
          %143 = vsyncadd [#allocation6], 0
          %s145 = sshll.u32 %s2, 4
          %s146 = int_to_ptr.hbm [resolvable:$true] %s145
          %s147 = sshll.u32 [#allocation7], 4
          %s148 = int_to_ptr.vmem [resolvable:$true] %s147
          %150 = dma.hbm_to_vmem [thread:$0]  %s146, 32, %s148, [#allocation6]
        $region20: #{tpu_custom_call.1} parent=11 // pred_fallthru
          _
      $region12: #{tpu_custom_call.1} parent=5 // pred_fallthru
        _
      %p151 = scmp.lt.s32.totalorder %s16, 2
      // Predicated region
      $region21: #{tpu_custom_call.1} parent=5 // pred_check
        %p152 = pneg %p151
      $region22: #{tpu_custom_call.1} parent=5 // pred_check_branch
        %154 = sbr.rel (%p152) target = $region24
      $region23: #{tpu_custom_call.1} parent=5 // pred_region
        // Predicated region
        $region25: #{tpu_custom_call.1} parent=23 // pred_check
          %p155 = pneg %p36
        $region26: #{tpu_custom_call.1} parent=23 // pred_check_branch
          %157 = sbr.rel (%p155) target = $region28
        $region27: #{tpu_custom_call.1} parent=23 // pred_region
          %s158 = sand.u32 %s26, 1
          %s159 = scalar_lea.sflag [#allocation3], %s158
          %s160 = sand.u32 %s26, 1
          %s161 = smul.addr %s160, 8
          %s162 = scalar_lea.vmem [#allocation2], %s161
          %164 = vsyncadd %s159, 0
          %s165 = smul.addr %s16, 8
          %s166 = scalar_lea.hbm %s0, %s165
          %s168 = sshll.u32 %s166, 4
          %s169 = int_to_ptr.hbm [resolvable:$true] %s168
          %s170 = sshll.u32 %s162, 4
          %s171 = int_to_ptr.vmem [resolvable:$true] %s170
          %173 = dma.hbm_to_vmem [thread:$0]  %s169, 128, %s171, %s159
        $region28: #{tpu_custom_call.1} parent=23 // pred_fallthru
          _
      $region24: #{tpu_custom_call.1} parent=5 // pred_fallthru
        _
      %p174 = scmp.le.s32.totalorder 1, %s16
      %p175 = scmp.lt.s32.totalorder %s16, 3
      %p176 = pnand %p174, %p175
      %p177 = pneg %p176
      // Predicated region
      $region29: #{tpu_custom_call.1} parent=5 // pred_check
        _
      $region30: #{tpu_custom_call.1} parent=5 // pred_check_branch
        %179 = sbr.rel (%p176) target = $region32
      $region31: #{tpu_custom_call.1} parent=5 // pred_region
        %s180 = ssub.s32 %s16, 1
        %s181 = sand.u32 %s29, 1
        %s182 = scalar_lea.sflag [#allocation3], %s181
        %s183 = sand.u32 %s29, 1
        %s184 = smul.addr %s183, 8
        %s185 = scalar_lea.vmem [#allocation2], %s184
        // Predicated region
        $region33: #{tpu_custom_call.1} parent=31 // pred_check
          %p186 = pneg %p42
        $region34: #{tpu_custom_call.1} parent=31 // pred_check_branch
          %188 = sbr.rel (%p186) target = $region36
        $region35: #{tpu_custom_call.1} parent=31 // pred_region
          %190 = dma.done %s182, 128
        $region36: #{tpu_custom_call.1} parent=31 // pred_fallthru
          _
        // Predicated region
        $region37: #{tpu_custom_call.1} parent=31 // pred_check
          %p191 = pneg %p63
        $region38: #{tpu_custom_call.1} parent=31 // pred_check_branch
          %193 = sbr.rel (%p191) target = $region40
        $region39: #{tpu_custom_call.1} parent=31 // pred_region
          %195 = dma.done [#allocation6], 1024
        $region40: #{tpu_custom_call.1} parent=31 // pred_fallthru
          _
        // Predicated region
        $region41: #{tpu_custom_call.1} parent=31 // pred_check
          %p196 = pneg %p84
        $region42: #{tpu_custom_call.1} parent=31 // pred_check_branch
          %198 = sbr.rel (%p196) target = $region44
        $region43: #{tpu_custom_call.1} parent=31 // pred_region
          %200 = dma.done [#allocation6], 32
        $region44: #{tpu_custom_call.1} parent=31 // pred_fallthru
          _
        %s201 = sand.u32 %s29, 1
        %s202 = scalar_lea.sflag [#allocation3], %s201
        %s203 = sand.u32 %s29, 1
        %s204 = smul.addr %s203, 8
        %s205 = scalar_lea.vmem [#allocation2], %s204
        %p206 = pneg %p42
        %p207 = pneg %p39
        %p208 = pneg %p63
        %p209 = pneg %p60
        %p210 = pneg %p84
        %p211 = pneg %p81
        %p212 = pneg %p110
        %p213 = pneg %p107
        %s214 = sand.u32 %s97, 1
        %s215 = scalar_lea.sflag [#allocation4], %s214
        %s216 = sand.u32 %s97, 1
        %s217 = smul.addr %s216, 16
        %s218 = scalar_lea.vmem [#allocation8], %s217
        %v220 = vld [vmem:[%s185] sm:$0xff]
        %v221 = vld [vmem:[#allocation5] sm:$0xff]
        %v222 = vld [vmem:[#allocation5 + $0x8] sm:$0xff]
        %v223 = vld [vmem:[#allocation5 + $0x10] sm:$0xff]
        %v224 = vld [vmem:[#allocation5 + $0x18] sm:$0xff]
        %v225 = vld [vmem:[#allocation5 + $0x20] sm:$0xff]
        %v226 = vld [vmem:[#allocation5 + $0x28] sm:$0xff]
        %v227 = vld [vmem:[#allocation5 + $0x30] sm:$0xff]
        %v228 = vld [vmem:[#allocation5 + $0x38] sm:$0xff]
        %v229 = vld [vmem:[#allocation7] sm:$0x3]
        %v230 = vpack.c.bf16 %v220, %v220
        %v239 = vunpack.c.l.b16 %v221
        %v240 = vunpack.c.h.b16 %v221
        %v241 = vunpack.c.l.b16 %v222
        %v242 = vunpack.c.h.b16 %v222
        %v243 = vunpack.c.l.b16 %v223
        %v244 = vunpack.c.h.b16 %v223
        %v245 = vunpack.c.l.b16 %v224
        %v246 = vunpack.c.h.b16 %v224
        %v247 = vunpack.c.l.b16 %v225
        %v248 = vunpack.c.h.b16 %v225
        %v249 = vunpack.c.l.b16 %v226
        %v250 = vunpack.c.h.b16 %v226
        %v251 = vunpack.c.l.b16 %v227
        %v252 = vunpack.c.h.b16 %v227
        %v253 = vunpack.c.l.b16 %v228
        %v254 = vunpack.c.h.b16 %v228
        %v255 = vpack.c.b16 %v241, %v239
        %v256 = vpack.c.b16 %v242, %v240
        %v257 = vpack.c.b16 %v245, %v243
        %v258 = vpack.c.b16 %v246, %v244
        %v259 = vpack.c.b16 %v249, %v247
        %v260 = vpack.c.b16 %v250, %v248
        %v261 = vpack.c.b16 %v253, %v251
        %v262 = vpack.c.b16 %v254, %v252
        %vm271 = vcmask 523264
        %v273 = vsel %vm271, %v230, 0
        %275 = vmatpush.bf16.msra.mxu0 0
        %276 = vmatpush.bf16.msra.mxu0 0
        %277 = vmatpush.bf16.msra.mxu0 0
        %278 = vmatpush.bf16.msra.mxu0 0
        %279 = vmatpush.bf16.msra.mxu0 %v261
        %280 = vmatpush.bf16.msra.mxu0 %v259
        %281 = vmatpush.bf16.msra.mxu0 %v257
        %282 = vmatpush.bf16.msra.mxu0 %v255
        %283 = vmatmul.bf16.gmra.mxu0 %v273
        %v284 = vpop.f32.mrf.mxu0
        %v285 = vadd.f32 0.0, %v284
        %v286 = vpop.f32.mrf.mxu0
        %287 = vdwg.mxu0
        %288 = vmatpush.bf16.msra.mxu0 0
        %289 = vmatpush.bf16.msra.mxu0 0
        %290 = vmatpush.bf16.msra.mxu0 0
        %291 = vmatpush.bf16.msra.mxu0 0
        %292 = vmatpush.bf16.msra.mxu0 %v262
        %293 = vmatpush.bf16.msra.mxu0 %v260
        %294 = vmatpush.bf16.msra.mxu0 %v258
        %295 = vmatpush.bf16.msra.mxu0 %v256
        %296 = vmatmul.bf16.gmra.mxu0 %v273
        %v297 = vpop.f32.mrf.mxu0
        %v298 = vadd.f32 0.0, %v297
        %v299 = vpop.f32.mrf.mxu0
        %300 = vdwg.mxu0
        %v302 = vperm.slane %v229, 0
        %v303 = vperm.slane %v229, 1
        %v306 = vmul.f32 %v285, %v302
        %v307 = vmul.f32 %v298, %v303
        %v308 = vmul.f32 %v306, 1.442695
        %v309 = vpow.pop %v308
        %v310 = vmul.f32 %v307, 1.442695
        %v311 = vpow.pop %v310
        %v312 = vmul.f32 %v306, 0.01
        %v313 = vmul.f32 %v307, 0.01
        %v314 = vmul.f32 %v312, %v306
        %v315 = vmul.f32 %v313, %v307
        %v316 = vsub.f32 1.0, %v314
        %v317 = vsub.f32 1.0, %v315
        %v318 = vmax.f32 %v316, 0.0
        %v319 = vmax.f32 %v317, 0.0
        %v320 = vrsqrt.pop %v318
        %v321 = vmul.f32 %v320, %v318
        %v322 = vmul.f32 %v321, %v320
        %v323 = vmul.f32 0.5, %v322
        %v324 = vsub.f32 1.5, %v323
        %v325 = vmul.f32 %v320, %v324
        %v326 = vmul.f32 %v318, %v325
        %vm327 = vcmp.eq.f32.partialorder %v318, inf
        %v328 = vsel %vm327, %v318, %v326
        %vm329 = vcmp.eq.f32.partialorder %v318, 0.0
        %v330 = vand.u32 %v318, 2147483648
        %v331 = vsel %vm329, %v330, %v328
        %v332 = vrsqrt.pop %v319
        %v333 = vmul.f32 %v332, %v319
        %v334 = vmul.f32 %v333, %v332
        %v335 = vmul.f32 0.5, %v334
        %v336 = vsub.f32 1.5, %v335
        %v337 = vmul.f32 %v332, %v336
        %v338 = vmul.f32 %v319, %v337
        %vm339 = vcmp.eq.f32.partialorder %v319, inf
        %v340 = vsel %vm339, %v319, %v338
        %vm341 = vcmp.eq.f32.partialorder %v319, 0.0
        %v342 = vand.u32 %v319, 2147483648
        %v343 = vsel %vm341, %v342, %v340
        %v344 = vmul.f32 %v306, 0.9950042
        %v345 = vmul.f32 %v307, 0.9950042
        %v346 = vmul.f32 %v331, 0.99833417
        %v347 = vmul.f32 %v343, 0.99833417
        %v348 = vsub.f32 %v344, %v346
        %v349 = vsub.f32 %v345, %v347
        %v350 = vmul.f32 %v348, 1.442695
        %v351 = vpow.pop %v350
        %v352 = vmul.f32 %v349, 1.442695
        %v353 = vpow.pop %v352
        %v354 = vadd.f32 %v309, %v311
        %355 = vadd.xlane.f32.xlu0 %v354
        %v356 = vpop.xlane.xlu0 %355
        %v357 = vsub.f32 %v356, %v309
        %v358 = vsub.f32 %v356, %v311
        %v359 = vadd.f32 %v357, %v351
        %v360 = vadd.f32 %v358, %v353
        %v361 = vrcp.pop %v359
        %v362 = vrcp.pop %v360
        %v363 = vmul.f32 %v351, %v361
        %v364 = vmul.f32 %v353, %v362
        %v365 = vadd.f32 %v363, 1e-10
        %v366 = vadd.f32 %v364, 1e-10
        %367 = vst [vmem:[%s218] sm:$0xff] %v365
        %368 = vst [vmem:[%s218 + $0x8] sm:$0xff] %v366
        %s369 = sand.u32 %s97, 1
        %s370 = scalar_lea.sflag [#allocation4], %s369
        %s371 = sand.u32 %s97, 1
        %s372 = smul.addr %s371, 16
        %s373 = scalar_lea.vmem [#allocation8], %s372
        // Predicated region
        $region45: #{tpu_custom_call.1} parent=31 // pred_check
          %p374 = pneg %p107
        $region46: #{tpu_custom_call.1} parent=31 // pred_check_branch
          %376 = sbr.rel (%p374) target = $region48
        $region47: #{tpu_custom_call.1} parent=31 // pred_region
          %378 = vsyncadd %s370, 0
          %s379 = smul.addr %s21, 2
          %s380 = smul.addr %s379, 8
          %s381 = scalar_lea.hbm %s3, %s380
          %s383 = sshll.u32 %s373, 4
          %s384 = int_to_ptr.vmem [resolvable:$true] %s383
          %s385 = sshll.u32 %s381, 4
          %s386 = int_to_ptr.hbm [resolvable:$true] %s385
          %388 = dma.vmem_to_hbm [thread:$0]  %s384, 256, %s386, %s370
        $region48: #{tpu_custom_call.1} parent=31 // pred_fallthru
          _
      $region32: #{tpu_custom_call.1} parent=5 // pred_fallthru
        _
      %p389 = scmp.le.s32.totalorder 2, %s16
      // Predicated region
      $region49: #{tpu_custom_call.1} parent=5 // pred_check
        %p390 = pneg %p389
      $region50: #{tpu_custom_call.1} parent=5 // pred_check_branch
        %392 = sbr.rel (%p390) target = $region52
      $region51: #{tpu_custom_call.1} parent=5 // pred_region
        %s393 = ssub.s32 %s16, 2
        // Predicated region
        $region53: #{tpu_custom_call.1} parent=51 // pred_check
          %p394 = pneg %p113
        $region54: #{tpu_custom_call.1} parent=51 // pred_check_branch
          %396 = sbr.rel (%p394) target = $region56
        $region55: #{tpu_custom_call.1} parent=51 // pred_region
          %s397 = sand.u32 %s98, 1
          %s398 = scalar_lea.sflag [#allocation4], %s397
          %s399 = sand.u32 %s98, 1
          %s400 = smul.addr %s399, 16
          %s401 = scalar_lea.vmem [#allocation8], %s400
          %403 = dma.done %s398, 256
        $region56: #{tpu_custom_call.1} parent=51 // pred_fallthru
          _
      $region52: #{tpu_custom_call.1} parent=5 // pred_fallthru
        _
    $region6: #{tpu_custom_call.1} parent=1 // loop_footer
      %s20 = sadd.s32 1, %s16
    $region7: #{tpu_custom_call.1} parent=1 // loop_footer_branch
      %15 = sbr.rel target = $region3
    $region8: #{tpu_custom_call.1} parent=1 // loop_exit
      _
    %404 = vsyncpa [#allocation3], 1
    %s405 = scalar_lea.sflag [#allocation3], 1
    %406 = vsyncpa %s405, 1
    %407 = vsyncpa [#allocation6], 1
    %408 = vsyncpa [#allocation4], 1
    %s409 = scalar_lea.sflag [#allocation4], 1
    %410 = vsyncpa %s409, 1

</llo_original>
